<compile_context>
chip_gen: v7x
topology: tpu7x:2x2x1
jax: 0.10.0
libtpu: 0.0.40
codegen_flags: <defaults>
</compile_context>

<pallas_src>
import numpy as np
import jax
import jax.numpy as jnp
from jax.experimental import pallas as pl
from jax.experimental.pallas import tpu as pltpu


def _dconv_matmul_kernel(p_ref, w_ref, b_ref, o_ref):
    # p_ref : (KKt, LT)   bf16 polyphase patch tile, rows=(th,tw,ci), lanes=(n,qh,qw) padded
    # w_ref : (Pm,  KKt)  bf16 resident weight panel, rows=(rh,rw,co)
    # b_ref : (Pm,  1)    f32 per-(phase, cout) bias column
    # o_ref : (Pm,  LT)   lane-dense output tile (multiple of 128 lanes)
    acc = jnp.dot(w_ref[...], p_ref[...], preferred_element_type=jnp.float32)
    o_ref[...] = (acc + b_ref[...]).astype(o_ref.dtype)


def dec_dconv_block(x_nchw, weight, bias, *, stride=2, padding=12):
    """ConvTranspose2d forward (stride, padding) as a single Pallas TPU matmul.

    x_nchw : (N, Cin, H, W)
    weight : (Cin, Cout, K, K)   -- PyTorch ConvTranspose2d weight layout
    bias   : (Cout,)
    returns (N, Cout, Ho, Wo), Ho = (H-1)*stride - 2*padding + K
    """
    N, Cin, H, W = map(int, x_nchw.shape)
    cin_w, Cout, K, K2 = map(int, weight.shape)
    assert cin_w == Cin and K == K2
    S, P = int(stride), int(padding)
    Ho = (H - 1) * S - 2 * P + K
    Wo = (W - 1) * S - 2 * P + K
    assert Ho > 0 and Wo > 0, "output size must be positive"

    # ---- trace-time polyphase analysis (numpy) -------------------------------------
    # For output o = S*q + r, the valid taps k satisfy (r + P - k) % S == 0 and read
    # input i = q + (r + P - k)//S.  For this module (S=2, P=12, K=4) all phases share
    # the same input offsets and every tap is in-bounds, so no masking is needed.
    def phase_taps(out_len, in_len):
        qs, k_sel, d_shared = [], [], None
        for r in range(S):
            q = -(-(out_len - r) // S)  # number of outputs in this phase
            taps = [(k, (r + P - k) // S) for k in range(K) if (r + P - k) % S == 0]
            taps.sort(key=lambda kd: -kd[1])          # consistent tap order across phases
            ks = [k for k, _ in taps]
            ds = [d for _, d in taps]
            # TODO(synk): general boundary-clipped ConvTranspose2d path (not needed for
            # this module: P=12 keeps every tap strictly inside the input).
            for d in ds:
                assert 0 <= d and d + q - 1 < in_len, "boundary clipping not supported"
            if d_shared is None:
                d_shared = ds
            assert ds == d_shared, "phases must share input offsets (requires P % S == 0)"
            qs.append(q)
            k_sel.append(ks)
        assert len(set(qs)) == 1, "all phases must have equal length (Ho % S == 0)"
        return qs[0], np.asarray(k_sel), d_shared

    Qh, kh_sel, Dh = phase_taps(Ho, H)   # kh_sel: (S, Th), Dh: Th input row offsets
    Qw, kw_sel, Dw = phase_taps(Wo, W)   # kw_sel: (S, Tw), Dw: Tw input col offsets
    Th, Tw = len(Dh), len(Dw)
    KKt = Th * Tw * Cin                  # contraction size (no structural zeros)
    Pm = S * S * Cout                    # output rows = (rh, rw, cout)
    L = N * Qh * Qw                      # true lane extent = (n, qh, qw)

    # ---- patch: Th*Tw contiguous crops of x (no gather, no zero inflation) ---------
    x_t = jnp.transpose(x_nchw, (1, 0, 2, 3))                     # (Cin, N, H, W)
    crops = [x_t[:, :, dh:dh + Qh, dw:dw + Qw] for dh in Dh for dw in Dw]
    patch = jnp.stack(crops, axis=0).reshape(KKt, L)              # rows=(th,tw,ci)

    # lane-pad to a multiple of 128 (unmasked full-lane stores); tile big problems
    LANE, MAX_TILE = 128, 1024
    Lpad = -(-L // LANE) * LANE
    if Lpad <= MAX_TILE:
        LT = Lpad
    else:
        LT = MAX_TILE
        Lpad = -(-L // LT) * LT
    patch = jnp.pad(patch, ((0, 0), (0, Lpad - L))).astype(jnp.bfloat16)

    # per-phase weight panel: W_all[(rh,rw,co),(th,tw,ci)] = weight[ci,co,kh_sel[rh,th],kw_sel[rw,tw]]
    w_g = weight[:, :, kh_sel[:, :, None, None], kw_sel[None, None, :, :]]  # (Cin,Cout,S,Th,S,Tw)
    w_all = jnp.transpose(w_g, (2, 4, 1, 3, 5, 0)).reshape(Pm, KKt).astype(jnp.bfloat16)
    b_all = jnp.tile(bias.reshape(1, Cout), (S * S, 1)).reshape(Pm, 1).astype(jnp.float32)

    flops = 2 * Pm * KKt * Lpad
    bytes_accessed = (KKt * Lpad * 2) + (Pm * KKt * 2) + (Pm * 4) + (Pm * Lpad * x_nchw.dtype.itemsize)

    out_mat = pl.pallas_call(
        _dconv_matmul_kernel,
        out_shape=jax.ShapeDtypeStruct((Pm, Lpad), x_nchw.dtype),
        grid=(Lpad // LT,),
        in_specs=[
            pl.BlockSpec((KKt, LT), lambda j: (0, j)),     # patch lane-tile
            pl.BlockSpec((Pm, KKt), lambda j: (0, 0)),     # resident weights
            pl.BlockSpec((Pm, 1), lambda j: (0, 0)),       # resident bias
        ],
        out_specs=pl.BlockSpec((Pm, LT), lambda j: (0, j)),
        compiler_params=pltpu.CompilerParams(dimension_semantics=("parallel",)),
        cost_estimate=pl.CostEstimate(
            flops=flops, transcendentals=0, bytes_accessed=bytes_accessed),
    )(patch, w_all, b_all)

    # rows (rh, rw, co) x lanes (n, qh, qw)  ->  (N, Cout, Ho, Wo) phase interleave (tiny)
    res = out_mat[:, :L].reshape(S, S, Cout, N, Qh, Qw)
    out = jnp.transpose(res, (3, 2, 4, 0, 5, 1)).reshape(N, Cout, Ho, Wo)
    return out


def conv_transpose_ref(x, w, b, stride, padding):
    """Direct (slow) numpy reference with exact PyTorch ConvTranspose2d semantics."""
    N, Cin, H, W = x.shape
    _, Cout, K, _ = w.shape
    Ho = (H - 1) * stride - 2 * padding + K
    Wo = (W - 1) * stride - 2 * padding + K
    out = np.tile(b.reshape(1, Cout, 1, 1), (N, 1, Ho, Wo)).astype(np.float64)
    for ih in range(H):
        for kh in range(K):
            oh = ih * stride - padding + kh
            if oh < 0 or oh >= Ho:
                continue
            for iw in range(W):
                for kw in range(K):
                    ow = iw * stride - padding + kw
                    if ow < 0 or ow >= Wo:
                        continue
                    out[:, :, oh, ow] += x[:, :, ih, iw] @ w[:, :, kh, kw]
    return out


if __name__ == "__main__":
    # Module config: Dec_Dconv_Block(in_channels=4, out_channels=8, groups=8)
    # => ConvTranspose2d(4, 8, kernel_size=4, stride=2, padding=12)
    in_channels, out_channels, groups = 4, 8, 8
    K = groups // 2
    N, H, W = 2, 16, 16

    key = jax.random.PRNGKey(0)
    kx, kw, kb = jax.random.split(key, 3)
    x = jax.random.normal(kx, (N, in_channels, H, W), jnp.float32)
    weight = 0.1 * jax.random.normal(kw, (in_channels, out_channels, K, K), jnp.float32)
    bias = 0.1 * jax.random.normal(kb, (out_channels,), jnp.float32)

    out = jax.jit(dec_dconv_block)(x, weight, bias)
    out = jax.block_until_ready(out)

    ref = conv_transpose_ref(np.asarray(x, np.float64), np.asarray(weight, np.float64),
                             np.asarray(bias, np.float64), stride=2, padding=12)
    assert out.shape == ref.shape, (out.shape, ref.shape)
    # bf16 operands with f32 accumulation over a length-64-equivalent contraction
    np.testing.assert_allclose(np.asarray(out, np.float64), ref, rtol=2e-2, atol=2e-2)
    print("KERNEL_OK")
</pallas_src>

<mosaic_0001>
module attributes {stable_mosaic.version = 11 : i64} {
  func.func @_dconv_matmul_kernel(%arg0: i32, %arg1: memref<16x128xbf16, #tpu.memory_space<vmem>>, %arg2: memref<32x16xbf16, #tpu.memory_space<vmem>>, %arg3: memref<32x1xf32, #tpu.memory_space<vmem>>, %arg4: memref<32x128xf32, #tpu.memory_space<vmem>>) attributes {dimension_semantics = [#tpu.dimension_semantics<parallel>], iteration_bounds = array<i64: 1>, scalar_prefetch = 0 : i64, scratch_operands = 0 : i64, tpu.core_type = #tpu.core_type<tc>, window_params = [{transform_indices = @transform_0, window_bounds = array<i64: 16, 128>}, {pipeline_mode = #tpu.pipeline_mode<synchronous>, transform_indices = @transform_1, window_bounds = array<i64: 32, 16>}, {pipeline_mode = #tpu.pipeline_mode<synchronous>, transform_indices = @transform_2, window_bounds = array<i64: 32, 1>}, {transform_indices = @transform_3, window_bounds = array<i64: 32, 128>}]} {
    %c0 = arith.constant 0 : index
    %c0_0 = arith.constant 0 : index
    %0 = vector.load %arg2[%c0, %c0_0] : memref<32x16xbf16, #tpu.memory_space<vmem>>, vector<32x16xbf16>
    %c0_1 = arith.constant 0 : index
    %c0_2 = arith.constant 0 : index
    %1 = vector.load %arg1[%c0_1, %c0_2] : memref<16x128xbf16, #tpu.memory_space<vmem>>, vector<16x128xbf16>
    %cst = arith.constant dense<0.000000e+00> : vector<32x128xf32>
    %2 = tpu.matmul %0, %1, %cst {dimension_numbers = #tpu.dot_dimension_numbers<[1], [0], [0], [1], [0, 0, 1, 1], [], []>} : vector<32x16xbf16>, vector<16x128xbf16>, vector<32x128xf32> -> vector<32x128xf32>
    %c0_3 = arith.constant 0 : index
    %c0_4 = arith.constant 0 : index
    %3 = vector.load %arg3[%c0_3, %c0_4] : memref<32x1xf32, #tpu.memory_space<vmem>>, vector<32x1xf32>
    %4 = vector.broadcast %3 : vector<32x1xf32> to vector<32x128xf32>
    %5 = arith.addf %2, %4 : vector<32x128xf32>
    %c0_5 = arith.constant 0 : index
    %c0_6 = arith.constant 0 : index
    %6 = vector.load %arg4[%c0_5, %c0_6] : memref<32x128xf32, #tpu.memory_space<vmem>>, vector<32x128xf32>
    tpu.vector_store %arg4[%c0_5, %c0_6], %5 {strides = array<i32>} : memref<32x128xf32, #tpu.memory_space<vmem>>, vector<32x128xf32>,
    return
  }
  func.func @transform_0(%arg0: i32) -> (i32, i32) {
    %c0_i32 = arith.constant 0 : i32
    %c0_i32_0 = arith.constant 0 : i32
    return %c0_i32, %arg0 : i32, i32
  }
  func.func @transform_1(%arg0: i32) -> (i32, i32) {
    %c0_i32 = arith.constant 0 : i32
    %c0_i32_0 = arith.constant 0 : i32
    %c0_i32_1 = arith.constant 0 : i32
    return %c0_i32, %c0_i32_0 : i32, i32
  }
  func.func @transform_2(%arg0: i32) -> (i32, i32) {
    %c0_i32 = arith.constant 0 : i32
    %c0_i32_0 = arith.constant 0 : i32
    %c0_i32_1 = arith.constant 0 : i32
    return %c0_i32, %c0_i32_0 : i32, i32
  }
  func.func @transform_3(%arg0: i32) -> (i32, i32) {
    %c0_i32 = arith.constant 0 : i32
    %c0_i32_0 = arith.constant 0 : i32
    return %c0_i32, %arg0 : i32, i32
  }
}

</mosaic_0001>

<llo_original>
// kernel: tile.6
$region0: #{tile.6}
  #allocation0 [shape = 's32[1]{0}', space=sflag, size = 0x4, scoped, tag = 'scoped memory for tile.6']
  %s0 = inlined_call_operand.vmem [shape: f32[8], index: 0, kind: input, shape index: {}]
  %s1 = inlined_call_operand.vmem [shape: f32[4,1,1,8], index: 1, kind: output, shape index: {}]
  // Predicated region
  $region2: #{tile.6} parent=0 // pred_check
    _
  $region3: #{tile.6} parent=0 // pred_check_branch
    %3 = sbr.rel (0) target = $region5
  $region4: #{tile.6} parent=0 // pred_region
    _
  $region5: #{tile.6} parent=0 // pred_fallthru
    _
  %v4 = vld [vmem:[%s0] ss:$0 sm:$0xff]
  %5 = vst [vmem:[%s1] sm:$0xf] %v4

// kernel: tile.0
$region0: #{tile.0}
  %s0 = inlined_call_operand.vmem [shape: f32[4,1,1,8], index: 0, kind: input, shape index: {}]
  %s1 = inlined_call_operand.vmem [shape: f32[32,1], index: 1, kind: output, shape index: {}]
  $region1: #{tile.0} parent=0
    #allocation0 [shape = 'u8[4096]{0}', space=vmem, size = 0x1000, scoped, tag = 'scoped mem for input reshape']
    %s3 = sshllo.u32 0, 4
    %v4 = vld [vmem:[%s0] sm:%s3]
    %5 = vst [vmem:[#allocation0] sm:%s3] %v4
    %v6 = vld [vmem:[#allocation0] sm:$0xf]
    %vm7 = vcmask 7168
    %8 = vst.msk [vmem:[%s1] ss:$8 sm:$0xf] %vm7, %v6
    %v9 = vld [vmem:[#allocation0] sm:$0xf]
    %10 = vrot.lane.b32.xlu0 %v9, 127
    %v11 = vpop.permute.xlu0 %10
    %vm12 = vcmask 7168
    %s13 = scalar_lea.vmem %s1, 1
    %14 = vst.msk [vmem:[%s13] ss:$8 sm:$0xf] %vm12, %v11
    %v15 = vld [vmem:[#allocation0] sm:$0xf]
    %16 = vrot.lane.b32.xlu0 %v15, 126
    %v17 = vpop.permute.xlu0 %16
    %vm18 = vcmask 7168
    %s19 = scalar_lea.vmem %s1, 2
    %20 = vst.msk [vmem:[%s19] ss:$8 sm:$0xf] %vm18, %v17
    %v21 = vld [vmem:[#allocation0] sm:$0xf]
    %22 = vrot.lane.b32.xlu0 %v21, 125
    %v23 = vpop.permute.xlu0 %22
    %vm24 = vcmask 7168
    %s25 = scalar_lea.vmem %s1, 3
    %26 = vst.msk [vmem:[%s25] ss:$8 sm:$0xf] %vm24, %v23
    %v27 = vld [vmem:[#allocation0] sm:$0xf]
    %28 = vrot.lane.b32.xlu0 %v27, 124
    %v29 = vpop.permute.xlu0 %28
    %vm30 = vcmask 7168
    %s31 = scalar_lea.vmem %s1, 4
    %32 = vst.msk [vmem:[%s31] ss:$8 sm:$0xf] %vm30, %v29
    %v33 = vld [vmem:[#allocation0] sm:$0xf]
    %34 = vrot.lane.b32.xlu0 %v33, 123
    %v35 = vpop.permute.xlu0 %34
    %vm36 = vcmask 7168
    %s37 = scalar_lea.vmem %s1, 5
    %38 = vst.msk [vmem:[%s37] ss:$8 sm:$0xf] %vm36, %v35
    %v39 = vld [vmem:[#allocation0] sm:$0xf]
    %40 = vrot.lane.b32.xlu0 %v39, 122
    %v41 = vpop.permute.xlu0 %40
    %vm42 = vcmask 7168
    %s43 = scalar_lea.vmem %s1, 6
    %44 = vst.msk [vmem:[%s43] ss:$8 sm:$0xf] %vm42, %v41
    %v45 = vld [vmem:[#allocation0] sm:$0xf]
    %46 = vrot.lane.b32.xlu0 %v45, 121
    %v47 = vpop.permute.xlu0 %46
    %vm48 = vcmask 7168
    %s49 = scalar_lea.vmem %s1, 7
    %50 = vst.msk [vmem:[%s49] ss:$8 sm:$0xf] %vm48, %v47

// kernel: dec_dconv_block.1
$region0: #{dec_dconv_block.1}
  #allocation0 [shape = 'u32[]', space=smem, size = 0x4, offset = 0x4, fixed_abs, tag = 'smem constant byte address 0x4 - core index']
  #allocation1 [shape = 'u32[144,128]{1,0:T(1,128)}', space=vmem, size = 0x12000, scoped, tag = 'internal scratch']
  %s0 = inlined_call_operand.vmem [shape: bf16[16,128], index: 0, kind: input, shape index: {}]
  %s1 = inlined_call_operand.vmem [shape: bf16[32,16], index: 1, kind: input, shape index: {}]
  %s2 = inlined_call_operand.vmem [shape: f32[32,1], index: 2, kind: input, shape index: {}]
  %s3 = inlined_call_operand.vmem [shape: f32[32,128], index: 3, kind: output, shape index: {}]
  %s4 = sld [smem:[#allocation0]]
  $region22: #{dec_dconv_block.1} parent=0
    _
  %s6 = ssub.s32 1, %s4
  %s7 = scalar_select 0, %s6, %s4
  // Predicated region
  $region2: #{dec_dconv_block.1} parent=0 // pred_check
    _
  $region3: #{dec_dconv_block.1} parent=0 // pred_check_branch
    %9 = sbr.rel (0) target = $region5
  $region4: #{dec_dconv_block.1} parent=0 // pred_region
    _
  $region5: #{dec_dconv_block.1} parent=0 // pred_fallthru
    _
  // Predicated region
  $region6: #{dec_dconv_block.1} parent=0 // pred_check
    _
  $region7: #{dec_dconv_block.1} parent=0 // pred_check_branch
    %11 = sbr.rel (0) target = $region9
  $region8: #{dec_dconv_block.1} parent=0 // pred_region
    _
  $region9: #{dec_dconv_block.1} parent=0 // pred_fallthru
    _
  // Predicated region
  $region10: #{dec_dconv_block.1} parent=0 // pred_check
    _
  $region11: #{dec_dconv_block.1} parent=0 // pred_check_branch
    %13 = sbr.rel (0) target = $region13
  $region12: #{dec_dconv_block.1} parent=0 // pred_region
    _
  $region13: #{dec_dconv_block.1} parent=0 // pred_fallthru
    _
  %v15 = vld [vmem:[%s1] sm:$0xf]
  %v16 = vld [vmem:[%s1 + $0x4] sm:$0xf]
  %v17 = vld [vmem:[%s1 + $0x8] sm:$0xf]
  %v18 = vld [vmem:[%s1 + $0xc] sm:$0xf]
  %v19 = vld [vmem:[%s0] sm:$0xf]
  %v20 = vld [vmem:[%s0 + $0x4] sm:$0xf]
  %v21 = vld [vmem:[%s2] sm:$0xff]
  %v22 = vld [vmem:[%s2 + $0x8] sm:$0xff]
  %v23 = vld [vmem:[%s2 + $0x10] sm:$0xff]
  %v24 = vld [vmem:[%s2 + $0x18] sm:$0xff]
  %26 = vset.pattern.permute.xlu0 0
  %27 = vperm.xlu0 %26, %v21
  %v28 = vpop.permute.xlu0 %27
  %31 = vset.pattern.permute.xlu0 0
  %32 = vperm.xlu0 %31, %v22
  %v33 = vpop.permute.xlu0 %32
  %36 = vset.pattern.permute.xlu0 0
  %37 = vperm.xlu0 %36, %v23
  %v38 = vpop.permute.xlu0 %37
  %41 = vset.pattern.permute.xlu0 0
  %42 = vperm.xlu0 %41, %v24
  %v43 = vpop.permute.xlu0 %42
  %v49 = vunpack.c.l.b16 %v15
  %v50 = vunpack.c.l.b16 %v16
  %v51 = vunpack.c.l.b16 %v17
  %v52 = vunpack.c.l.b16 %v18
  %v53 = vpack.c.b16 %v50, %v49
  %v54 = vpack.c.b16 %v52, %v51
  %v57 = vunpack.c.l.b16 %v19
  %v58 = vunpack.c.l.b16 %v20
  %v59 = vpack.c.b16 %v58, %v57
  %vm61 = vcmask 130048
  %v63 = vsel %vm61, %v53, 0
  %v66 = vsel %vm61, %v54, 0
  %68 = vmatprep.subr.bf16.mxu0 0
  %69 = vmatpush1.bf16.msra.mxu0 %v59
  %70 = vmatprep.subr.bf16.mxu0 0
  %71 = vmatpush1.bf16.msra.mxu0 0
  %72 = vmatprep.subr.bf16.mxu0 0
  %73 = vmatpush1.bf16.msra.mxu0 0
  %74 = vmatprep.subr.bf16.mxu0 0
  %75 = vmatpush1.bf16.msra.mxu0 0
  %76 = vmatprep.subr.bf16.mxu0 0
  %77 = vmatpush1.bf16.msra.mxu0 0
  %78 = vmatprep.subr.bf16.mxu0 0
  %79 = vmatpush1.bf16.msra.mxu0 0
  %80 = vmatprep.subr.bf16.mxu0 0
  %81 = vmatpush1.bf16.msra.mxu0 0
  %82 = vmatprep.subr.bf16.mxu0 0
  %83 = vmatpush1.bf16.msra.mxu0 0
  %84 = vmatprep.subr.bf16.mxu0 0
  %85 = vmatpush1.bf16.msra.mxu0 0
  %86 = vmatprep.subr.bf16.mxu0 0
  %87 = vmatpush1.bf16.msra.mxu0 0
  %88 = vmatprep.subr.bf16.mxu0 0
  %89 = vmatpush1.bf16.msra.mxu0 0
  %90 = vmatprep.subr.bf16.mxu0 0
  %91 = vmatpush1.bf16.msra.mxu0 0
  %92 = vmatprep.subr.bf16.mxu0 0
  %93 = vmatpush1.bf16.msra.mxu0 0
  %94 = vmatprep.subr.bf16.mxu0 0
  %95 = vmatpush1.bf16.msra.mxu0 0
  %96 = vmatprep.subr.bf16.mxu0 0
  %97 = vmatpush1.bf16.msra.mxu0 0
  %98 = vmatprep.subr.bf16.mxu0 0
  %99 = vmatpush1.bf16.msra.mxu0 0
  %100 = vmatprep.mubr.bf16.mxu0 0
  %101 = vmatmul.mubr.bf16.gmra.mrb[0].mxu0 %v63
  %v102 = vpop.f32.mrb[0].mxu0
  %v103 = vadd.f32 %v28, %v102
  %v104 = vpop.f32.mrb[0].mxu0
  %v105 = vpop.f32.mrb[0].mxu0
  %v106 = vadd.f32 %v33, %v105
  %v107 = vpop.f32.mrb[0].mxu0
  %108 = vmatprep.mubr.bf16.mxu0 0
  %109 = vmatmul.mubr.bf16.gmra.mrb[0].mxu0 %v66
  %v110 = vpop.f32.mrb[0].mxu0
  %v111 = vadd.f32 %v38, %v110
  %v112 = vpop.f32.mrb[0].mxu0
  %v113 = vpop.f32.mrb[0].mxu0
  %v114 = vadd.f32 %v43, %v113
  %v115 = vpop.f32.mrb[0].mxu0
  %116 = vdwg.mxu0
  %117 = vst [vmem:[%s3] sm:$0xff] %v103
  %118 = vst [vmem:[%s3 + $0x8] sm:$0xff] %v106
  %119 = vst [vmem:[%s3 + $0x10] sm:$0xff] %v111
  %120 = vst [vmem:[%s3 + $0x18] sm:$0xff] %v114
  // Predicated region
  $region14: #{dec_dconv_block.1} parent=0 // pred_check
    _
  $region15: #{dec_dconv_block.1} parent=0 // pred_check_branch
    %122 = sbr.rel (0) target = $region17
  $region16: #{dec_dconv_block.1} parent=0 // pred_region
    _
  $region17: #{dec_dconv_block.1} parent=0 // pred_fallthru
    _
  // Predicated region
  $region18: #{dec_dconv_block.1} parent=0 // pred_check
    _
  $region19: #{dec_dconv_block.1} parent=0 // pred_check_branch
    %124 = sbr.rel (0) target = $region21
  $region20: #{dec_dconv_block.1} parent=0 // pred_region
    _
  $region21: #{dec_dconv_block.1} parent=0 // pred_fallthru
    _

</llo_original>
